<compile_context>
chip_gen: v5e
topology: v5e:2x2
jax: 0.10.0
libtpu: 0.0.40
codegen_flags: <defaults>
</compile_context>

<pallas_src>
import functools

import jax
import jax.numpy as jnp
from jax.experimental import pallas as pl
from jax.experimental.pallas import tpu as pltpu


def attention_token_kernel(x_ref, w_ref, b_ref, p_ref, out_ref, *, batch, seq):
    x = x_ref[...]          # (B*S, E), rows are b-major: row = b*seq + s
    w = w_ref[...]          # (E, E)
    bias = b_ref[...]       # (1, E)   per-embedding-channel bias (matches PyTorch expand+transpose)
    proj = p_ref[...]       # (1, E)

    # word_squish = tanh(x @ W + bias): ONE MXU push for the whole batch.
    h = jnp.tanh(jnp.dot(x, w, preferred_element_type=jnp.float32) + bias)

    # word_attn = tanh(h @ proj) as a lane reduction -> (B*S, 1)
    scores = jnp.tanh(jnp.sum(h * proj, axis=-1, keepdims=True))

    # Per-batch softmax over S (contiguous row blocks) + fused (B, 2, S, E) write.
    for b in range(batch):                          # static unroll; batch is tiny
        lo = b * seq
        xb = x[lo:lo + seq, :]                      # (S, E)
        sb = scores[lo:lo + seq, :]                 # (S, 1)
        m = jnp.max(sb, axis=0, keepdims=True)
        e = jnp.exp(sb - m)
        a = e * pl.reciprocal(jnp.sum(e, axis=0, keepdims=True), approx=True)
        out_ref[b, 0, :, :] = xb.astype(out_ref.dtype)            # passthrough slot of the cat
        out_ref[b, 1, :, :] = (xb * a).astype(out_ref.dtype)      # attention-weighted slot


def attention_token_forward(x_sbe, W, bias, proj):
    """x_sbe: (S, B, E) like the PyTorch module. Returns (B, 2, S, E)."""
    S, B, E = x_sbe.shape
    # Single tiny (<4 KiB) fused transpose+reshape so rows are b-major (B*S, E):
    # lets the kernel do one batched matmul and contiguous per-batch slices.
    x2d = jnp.transpose(x_sbe, (1, 0, 2)).reshape(B * S, E)
    # PyTorch's (E,1) bias is expand(E,B).transpose(0,1)-broadcast, i.e. bias[e] is
    # added to embedding channel e — equivalent to a (1, E) row bias.
    bias_row = bias.reshape(1, E)
    proj_row = proj.reshape(1, E)

    kernel = functools.partial(attention_token_kernel, batch=B, seq=S)
    return pl.pallas_call(
        kernel,
        out_shape=jax.ShapeDtypeStruct((B, 2, S, E), x_sbe.dtype),
        grid=(1,),
        in_specs=[
            pl.BlockSpec((B * S, E), lambda i: (0, 0)),      # x, whole batch in one program
            pl.BlockSpec((E, E), lambda i: (0, 0)),          # W
            pl.BlockSpec((1, E), lambda i: (0, 0)),          # bias row
            pl.BlockSpec((1, E), lambda i: (0, 0)),          # proj row
        ],
        out_specs=pl.BlockSpec((B, 2, S, E), lambda i: (0, 0, 0, 0)),
        compiler_params=pltpu.CompilerParams(dimension_semantics=("arbitrary",)),
    )(x2d, W, bias_row, proj_row)


def reference_forward(x_sbe, W, bias, proj):
    """Pure-JAX reference mirroring the PyTorch forward, for verification."""
    squish = jnp.tanh(jnp.einsum("sbe,ef->sbf", x_sbe, W) + bias.reshape(1, 1, -1))
    attn = jnp.tanh(jnp.einsum("sbe,e->sb", squish, proj.reshape(-1)))
    attn_norm = jax.nn.softmax(attn.T, axis=1)                        # (B, S)
    x_bse = jnp.transpose(x_sbe, (1, 0, 2))
    return jnp.stack([x_bse, x_bse * attn_norm[:, :, None]], axis=1)  # (B, 2, S, E)


if __name__ == "__main__":
    E = 30          # embed_dim: the PyTorch module hardcodes 30 in attention_mul
    S, B = 8, 4     # seq length, batch size

    key = jax.random.PRNGKey(0)
    kx, kw, kb, kp = jax.random.split(key, 4)
    x = jax.random.normal(kx, (S, B, E), dtype=jnp.float32)
    W = jax.random.uniform(kw, (E, E), minval=-0.1, maxval=0.1, dtype=jnp.float32)
    # bias_word is uninitialized storage in the PyTorch __init__; initialize deterministically here.
    bias = jax.random.uniform(kb, (E, 1), minval=-0.1, maxval=0.1, dtype=jnp.float32)
    proj = jax.random.uniform(kp, (E, 1), minval=-0.1, maxval=0.1, dtype=jnp.float32)

    out = attention_token_forward(x, W, bias, proj)
    out = jax.block_until_ready(out)

    ref = reference_forward(x, W, bias, proj)
    assert out.shape == (B, 2, S, E), out.shape
    # Tolerance accounts for the EUP approx-reciprocal in the softmax denominator.
    assert jnp.allclose(out, ref, atol=2e-3, rtol=2e-3), "mismatch vs reference"
    print("KERNEL_OK")
</pallas_src>

<mosaic_0001>
module attributes {stable_mosaic.version = 11 : i64} {
  func.func @attention_token_kernel(%arg0: i32, %arg1: memref<32x30xf32, #tpu.memory_space<vmem>>, %arg2: memref<30x30xf32, #tpu.memory_space<vmem>>, %arg3: memref<1x30xf32, #tpu.memory_space<vmem>>, %arg4: memref<1x30xf32, #tpu.memory_space<vmem>>, %arg5: memref<4x2x8x30xf32, #tpu.memory_space<vmem>>) attributes {dimension_semantics = [#tpu.dimension_semantics<arbitrary>], iteration_bounds = array<i64: 1>, scalar_prefetch = 0 : i64, scratch_operands = 0 : i64, tpu.core_type = #tpu.core_type<tc>, window_params = [{pipeline_mode = #tpu.pipeline_mode<synchronous>, transform_indices = @transform_0, window_bounds = array<i64: 32, 30>}, {pipeline_mode = #tpu.pipeline_mode<synchronous>, transform_indices = @transform_1, window_bounds = array<i64: 30, 30>}, {pipeline_mode = #tpu.pipeline_mode<synchronous>, transform_indices = @transform_2, window_bounds = array<i64: 1, 30>}, {pipeline_mode = #tpu.pipeline_mode<synchronous>, transform_indices = @transform_3, window_bounds = array<i64: 1, 30>}, {pipeline_mode = #tpu.pipeline_mode<synchronous>, transform_indices = @transform_4, window_bounds = array<i64: 4, 2, 8, 30>}]} {
    %c0 = arith.constant 0 : index
    %c0_0 = arith.constant 0 : index
    %0 = vector.load %arg1[%c0, %c0_0] : memref<32x30xf32, #tpu.memory_space<vmem>>, vector<32x30xf32>
    %c0_1 = arith.constant 0 : index
    %c0_2 = arith.constant 0 : index
    %1 = vector.load %arg2[%c0_1, %c0_2] : memref<30x30xf32, #tpu.memory_space<vmem>>, vector<30x30xf32>
    %c0_3 = arith.constant 0 : index
    %c0_4 = arith.constant 0 : index
    %2 = vector.load %arg3[%c0_3, %c0_4] : memref<1x30xf32, #tpu.memory_space<vmem>>, vector<1x30xf32>
    %c0_5 = arith.constant 0 : index
    %c0_6 = arith.constant 0 : index
    %3 = vector.load %arg4[%c0_5, %c0_6] : memref<1x30xf32, #tpu.memory_space<vmem>>, vector<1x30xf32>
    %cst = arith.constant dense<0.000000e+00> : vector<32x30xf32>
    %4 = tpu.matmul %0, %1, %cst {dimension_numbers = #tpu.dot_dimension_numbers<[1], [0], [0], [1], [0, 0, 1, 1], [], []>} : vector<32x30xf32>, vector<30x30xf32>, vector<32x30xf32> -> vector<32x30xf32>
    %5 = vector.broadcast %2 : vector<1x30xf32> to vector<32x30xf32>
    %6 = arith.addf %4, %5 : vector<32x30xf32>
    %7 = math.tanh %6 : vector<32x30xf32>
    %8 = vector.broadcast %3 : vector<1x30xf32> to vector<32x30xf32>
    %9 = arith.mulf %7, %8 : vector<32x30xf32>
    %cst_7 = arith.constant dense<0.000000e+00> : vector<32xf32>
    %10 = vector.multi_reduction <add>, %9, %cst_7 [1] : vector<32x30xf32> to vector<32xf32>
    %11 = vector.shape_cast %10 : vector<32xf32> to vector<32x1xf32>
    %12 = math.tanh %11 : vector<32x1xf32>
    %13 = vector.extract_strided_slice %0 {offsets = [0, 0], sizes = [8, 30], strides = [1, 1]} : vector<32x30xf32> to vector<8x30xf32>
    %14 = vector.extract_strided_slice %12 {offsets = [0, 0], sizes = [8, 1], strides = [1, 1]} : vector<32x1xf32> to vector<8x1xf32>
    %cst_8 = arith.constant dense<0xFF800000> : vector<1xf32>
    %15 = vector.multi_reduction <maximumf>, %14, %cst_8 [0] : vector<8x1xf32> to vector<1xf32>
    %16 = vector.shape_cast %15 : vector<1xf32> to vector<1x1xf32>
    %17 = vector.broadcast %16 : vector<1x1xf32> to vector<8x1xf32>
    %18 = arith.subf %14, %17 : vector<8x1xf32>
    %19 = math.exp %18 : vector<8x1xf32>
    %cst_9 = arith.constant dense<0.000000e+00> : vector<1xf32>
    %20 = vector.multi_reduction <add>, %19, %cst_9 [0] : vector<8x1xf32> to vector<1xf32>
    %21 = vector.shape_cast %20 : vector<1xf32> to vector<1x1xf32>
    %22 = tpu.reciprocal %21 {approx = true} : vector<1x1xf32> -> vector<1x1xf32>
    %23 = vector.broadcast %22 : vector<1x1xf32> to vector<8x1xf32>
    %24 = arith.mulf %19, %23 : vector<8x1xf32>
    %c0_10 = arith.constant 0 : index
    %c0_11 = arith.constant 0 : index
    %c0_12 = arith.constant 0 : index
    %c0_13 = arith.constant 0 : index
    %25 = vector.load %arg5[%c0_10, %c0_11, %c0_12, %c0_13] : memref<4x2x8x30xf32, #tpu.memory_space<vmem>>, vector<1x1x8x30xf32>
    %26 = vector.shape_cast %25 : vector<1x1x8x30xf32> to vector<8x30xf32>
    %27 = vector.shape_cast %13 : vector<8x30xf32> to vector<1x1x8x30xf32>
    tpu.vector_store %arg5[%c0_10, %c0_11, %c0_12, %c0_13], %27 {strides = array<i32>} : memref<4x2x8x30xf32, #tpu.memory_space<vmem>>, vector<1x1x8x30xf32>,
    %28 = vector.broadcast %24 : vector<8x1xf32> to vector<8x30xf32>
    %29 = arith.mulf %13, %28 : vector<8x30xf32>
    %c0_14 = arith.constant 0 : index
    %c1 = arith.constant 1 : index
    %c0_15 = arith.constant 0 : index
    %c0_16 = arith.constant 0 : index
    %30 = vector.load %arg5[%c0_14, %c1, %c0_15, %c0_16] : memref<4x2x8x30xf32, #tpu.memory_space<vmem>>, vector<1x1x8x30xf32>
    %31 = vector.shape_cast %30 : vector<1x1x8x30xf32> to vector<8x30xf32>
    %32 = vector.shape_cast %29 : vector<8x30xf32> to vector<1x1x8x30xf32>
    tpu.vector_store %arg5[%c0_14, %c1, %c0_15, %c0_16], %32 {strides = array<i32>} : memref<4x2x8x30xf32, #tpu.memory_space<vmem>>, vector<1x1x8x30xf32>,
    %33 = vector.extract_strided_slice %0 {offsets = [8, 0], sizes = [8, 30], strides = [1, 1]} : vector<32x30xf32> to vector<8x30xf32>
    %34 = vector.extract_strided_slice %12 {offsets = [8, 0], sizes = [8, 1], strides = [1, 1]} : vector<32x1xf32> to vector<8x1xf32>
    %cst_17 = arith.constant dense<0xFF800000> : vector<1xf32>
    %35 = vector.multi_reduction <maximumf>, %34, %cst_17 [0] : vector<8x1xf32> to vector<1xf32>
    %36 = vector.shape_cast %35 : vector<1xf32> to vector<1x1xf32>
    %37 = vector.broadcast %36 : vector<1x1xf32> to vector<8x1xf32>
    %38 = arith.subf %34, %37 : vector<8x1xf32>
    %39 = math.exp %38 : vector<8x1xf32>
    %cst_18 = arith.constant dense<0.000000e+00> : vector<1xf32>
    %40 = vector.multi_reduction <add>, %39, %cst_18 [0] : vector<8x1xf32> to vector<1xf32>
    %41 = vector.shape_cast %40 : vector<1xf32> to vector<1x1xf32>
    %42 = tpu.reciprocal %41 {approx = true} : vector<1x1xf32> -> vector<1x1xf32>
    %43 = vector.broadcast %42 : vector<1x1xf32> to vector<8x1xf32>
    %44 = arith.mulf %39, %43 : vector<8x1xf32>
    %c1_19 = arith.constant 1 : index
    %c0_20 = arith.constant 0 : index
    %c0_21 = arith.constant 0 : index
    %c0_22 = arith.constant 0 : index
    %45 = vector.load %arg5[%c1_19, %c0_20, %c0_21, %c0_22] : memref<4x2x8x30xf32, #tpu.memory_space<vmem>>, vector<1x1x8x30xf32>
    %46 = vector.shape_cast %45 : vector<1x1x8x30xf32> to vector<8x30xf32>
    %47 = vector.shape_cast %33 : vector<8x30xf32> to vector<1x1x8x30xf32>
    tpu.vector_store %arg5[%c1_19, %c0_20, %c0_21, %c0_22], %47 {strides = array<i32>} : memref<4x2x8x30xf32, #tpu.memory_space<vmem>>, vector<1x1x8x30xf32>,
    %48 = vector.broadcast %44 : vector<8x1xf32> to vector<8x30xf32>
    %49 = arith.mulf %33, %48 : vector<8x30xf32>
    %c1_23 = arith.constant 1 : index
    %c1_24 = arith.constant 1 : index
    %c0_25 = arith.constant 0 : index
    %c0_26 = arith.constant 0 : index
    %50 = vector.load %arg5[%c1_23, %c1_24, %c0_25, %c0_26] : memref<4x2x8x30xf32, #tpu.memory_space<vmem>>, vector<1x1x8x30xf32>
    %51 = vector.shape_cast %50 : vector<1x1x8x30xf32> to vector<8x30xf32>
    %52 = vector.shape_cast %49 : vector<8x30xf32> to vector<1x1x8x30xf32>
    tpu.vector_store %arg5[%c1_23, %c1_24, %c0_25, %c0_26], %52 {strides = array<i32>} : memref<4x2x8x30xf32, #tpu.memory_space<vmem>>, vector<1x1x8x30xf32>,
    %53 = vector.extract_strided_slice %0 {offsets = [16, 0], sizes = [8, 30], strides = [1, 1]} : vector<32x30xf32> to vector<8x30xf32>
    %54 = vector.extract_strided_slice %12 {offsets = [16, 0], sizes = [8, 1], strides = [1, 1]} : vector<32x1xf32> to vector<8x1xf32>
    %cst_27 = arith.constant dense<0xFF800000> : vector<1xf32>
    %55 = vector.multi_reduction <maximumf>, %54, %cst_27 [0] : vector<8x1xf32> to vector<1xf32>
    %56 = vector.shape_cast %55 : vector<1xf32> to vector<1x1xf32>
    %57 = vector.broadcast %56 : vector<1x1xf32> to vector<8x1xf32>
    %58 = arith.subf %54, %57 : vector<8x1xf32>
    %59 = math.exp %58 : vector<8x1xf32>
    %cst_28 = arith.constant dense<0.000000e+00> : vector<1xf32>
    %60 = vector.multi_reduction <add>, %59, %cst_28 [0] : vector<8x1xf32> to vector<1xf32>
    %61 = vector.shape_cast %60 : vector<1xf32> to vector<1x1xf32>
    %62 = tpu.reciprocal %61 {approx = true} : vector<1x1xf32> -> vector<1x1xf32>
    %63 = vector.broadcast %62 : vector<1x1xf32> to vector<8x1xf32>
    %64 = arith.mulf %59, %63 : vector<8x1xf32>
    %c2 = arith.constant 2 : index
    %c0_29 = arith.constant 0 : index
    %c0_30 = arith.constant 0 : index
    %c0_31 = arith.constant 0 : index
    %65 = vector.load %arg5[%c2, %c0_29, %c0_30, %c0_31] : memref<4x2x8x30xf32, #tpu.memory_space<vmem>>, vector<1x1x8x30xf32>
    %66 = vector.shape_cast %65 : vector<1x1x8x30xf32> to vector<8x30xf32>
    %67 = vector.shape_cast %53 : vector<8x30xf32> to vector<1x1x8x30xf32>
    tpu.vector_store %arg5[%c2, %c0_29, %c0_30, %c0_31], %67 {strides = array<i32>} : memref<4x2x8x30xf32, #tpu.memory_space<vmem>>, vector<1x1x8x30xf32>,
    %68 = vector.broadcast %64 : vector<8x1xf32> to vector<8x30xf32>
    %69 = arith.mulf %53, %68 : vector<8x30xf32>
    %c2_32 = arith.constant 2 : index
    %c1_33 = arith.constant 1 : index
    %c0_34 = arith.constant 0 : index
    %c0_35 = arith.constant 0 : index
    %70 = vector.load %arg5[%c2_32, %c1_33, %c0_34, %c0_35] : memref<4x2x8x30xf32, #tpu.memory_space<vmem>>, vector<1x1x8x30xf32>
    %71 = vector.shape_cast %70 : vector<1x1x8x30xf32> to vector<8x30xf32>
    %72 = vector.shape_cast %69 : vector<8x30xf32> to vector<1x1x8x30xf32>
    tpu.vector_store %arg5[%c2_32, %c1_33, %c0_34, %c0_35], %72 {strides = array<i32>} : memref<4x2x8x30xf32, #tpu.memory_space<vmem>>, vector<1x1x8x30xf32>,
    %73 = vector.extract_strided_slice %0 {offsets = [24, 0], sizes = [8, 30], strides = [1, 1]} : vector<32x30xf32> to vector<8x30xf32>
    %74 = vector.extract_strided_slice %12 {offsets = [24, 0], sizes = [8, 1], strides = [1, 1]} : vector<32x1xf32> to vector<8x1xf32>
    %cst_36 = arith.constant dense<0xFF800000> : vector<1xf32>
    %75 = vector.multi_reduction <maximumf>, %74, %cst_36 [0] : vector<8x1xf32> to vector<1xf32>
    %76 = vector.shape_cast %75 : vector<1xf32> to vector<1x1xf32>
    %77 = vector.broadcast %76 : vector<1x1xf32> to vector<8x1xf32>
    %78 = arith.subf %74, %77 : vector<8x1xf32>
    %79 = math.exp %78 : vector<8x1xf32>
    %cst_37 = arith.constant dense<0.000000e+00> : vector<1xf32>
    %80 = vector.multi_reduction <add>, %79, %cst_37 [0] : vector<8x1xf32> to vector<1xf32>
    %81 = vector.shape_cast %80 : vector<1xf32> to vector<1x1xf32>
    %82 = tpu.reciprocal %81 {approx = true} : vector<1x1xf32> -> vector<1x1xf32>
    %83 = vector.broadcast %82 : vector<1x1xf32> to vector<8x1xf32>
    %84 = arith.mulf %79, %83 : vector<8x1xf32>
    %c3 = arith.constant 3 : index
    %c0_38 = arith.constant 0 : index
    %c0_39 = arith.constant 0 : index
    %c0_40 = arith.constant 0 : index
    %85 = vector.load %arg5[%c3, %c0_38, %c0_39, %c0_40] : memref<4x2x8x30xf32, #tpu.memory_space<vmem>>, vector<1x1x8x30xf32>
    %86 = vector.shape_cast %85 : vector<1x1x8x30xf32> to vector<8x30xf32>
    %87 = vector.shape_cast %73 : vector<8x30xf32> to vector<1x1x8x30xf32>
    tpu.vector_store %arg5[%c3, %c0_38, %c0_39, %c0_40], %87 {strides = array<i32>} : memref<4x2x8x30xf32, #tpu.memory_space<vmem>>, vector<1x1x8x30xf32>,
    %88 = vector.broadcast %84 : vector<8x1xf32> to vector<8x30xf32>
    %89 = arith.mulf %73, %88 : vector<8x30xf32>
    %c3_41 = arith.constant 3 : index
    %c1_42 = arith.constant 1 : index
    %c0_43 = arith.constant 0 : index
    %c0_44 = arith.constant 0 : index
    %90 = vector.load %arg5[%c3_41, %c1_42, %c0_43, %c0_44] : memref<4x2x8x30xf32, #tpu.memory_space<vmem>>, vector<1x1x8x30xf32>
    %91 = vector.shape_cast %90 : vector<1x1x8x30xf32> to vector<8x30xf32>
    %92 = vector.shape_cast %89 : vector<8x30xf32> to vector<1x1x8x30xf32>
    tpu.vector_store %arg5[%c3_41, %c1_42, %c0_43, %c0_44], %92 {strides = array<i32>} : memref<4x2x8x30xf32, #tpu.memory_space<vmem>>, vector<1x1x8x30xf32>,
    return
  }
  func.func @transform_0(%arg0: i32) -> (i32, i32) {
    %c0_i32 = arith.constant 0 : i32
    %c0_i32_0 = arith.constant 0 : i32
    %c0_i32_1 = arith.constant 0 : i32
    return %c0_i32, %c0_i32_0 : i32, i32
  }
  func.func @transform_1(%arg0: i32) -> (i32, i32) {
    %c0_i32 = arith.constant 0 : i32
    %c0_i32_0 = arith.constant 0 : i32
    %c0_i32_1 = arith.constant 0 : i32
    return %c0_i32, %c0_i32_0 : i32, i32
  }
  func.func @transform_2(%arg0: i32) -> (i32, i32) {
    %c0_i32 = arith.constant 0 : i32
    %c0_i32_0 = arith.constant 0 : i32
    %c0_i32_1 = arith.constant 0 : i32
    return %c0_i32, %c0_i32_0 : i32, i32
  }
  func.func @transform_3(%arg0: i32) -> (i32, i32) {
    %c0_i32 = arith.constant 0 : i32
    %c0_i32_0 = arith.constant 0 : i32
    %c0_i32_1 = arith.constant 0 : i32
    return %c0_i32, %c0_i32_0 : i32, i32
  }
  func.func @transform_4(%arg0: i32) -> (i32, i32, i32, i32) {
    %c0_i32 = arith.constant 0 : i32
    %c0_i32_0 = arith.constant 0 : i32
    %c0_i32_1 = arith.constant 0 : i32
    %c0_i32_2 = arith.constant 0 : i32
    %c0_i32_3 = arith.constant 0 : i32
    return %c0_i32, %c0_i32_0, %c0_i32_1, %c0_i32_2 : i32, i32, i32, i32
  }
}

</mosaic_0001>

<llo_original>
// kernel: tpu_custom_call.1
$region0: #{tpu_custom_call.1}
  #allocation0 [shape = 'u32[]', space=smem, size = 0x4, offset = 0x4, fixed_abs, tag = 'smem constant byte address 0x4 - core index']
  #allocation1 [shape = 'u32[72,128]{1,0:T(1,128)}', space=vmem, size = 0x9000, scoped, tag = 'internal scratch']
  %s0 = inlined_call_operand.hbm [shape: f32[32,30], index: 0, kind: input, shape index: {}]
  %s1 = inlined_call_operand.hbm [shape: f32[30,30], index: 1, kind: input, shape index: {}]
  %s2 = inlined_call_operand.vmem [shape: f32[1,30], index: 2, kind: input, shape index: {}]
  %s3 = inlined_call_operand.vmem [shape: f32[1,30], index: 3, kind: input, shape index: {}]
  %s4 = inlined_call_operand.hbm [shape: f32[4,2,8,30], index: 4, kind: output, shape index: {}]
  %s5 = sld [smem:[#allocation0]]
  $region34: #{tpu_custom_call.1} parent=0
    _
  %s7 = ssub.s32 1, %s5
  %s8 = scalar_select 0, %s7, %s5
  $region1: #{tpu_custom_call.1} parent=0
    #allocation2 [shape = 'u8[16384]{0}', space=vmem, size = 0x4000, scoped, tag = 'input window, operand 0, single buffered']
    #allocation3 [shape = 's32[1]{0}', space=sflag, size = 0x4, scoped, tag = 'scoped memory for tpu_custom_call.1']
    #allocation4 [shape = 's32[1]{0}', space=sflag, size = 0x4, scoped, tag = 'scoped memory for tpu_custom_call.1']
    #allocation5 [shape = 'u8[16384]{0}', space=vmem, size = 0x4000, scoped, tag = 'input window, operand 1, single buffered']
    #allocation6 [shape = 's32[1]{0}', space=sflag, size = 0x4, scoped, tag = 'scoped memory for tpu_custom_call.1']
    #allocation7 [shape = 'u8[32768]{0}', space=vmem, size = 0x8000, scoped, tag = 'output window, operand 0, single buffered']
    %9 = vsyncpa [#allocation3], 0
    %10 = vsyncpa [#allocation6], 0
    %11 = vsyncpa [#allocation4], 0
    // Predicated region
    $region2: #{tpu_custom_call.1} parent=1 // pred_check
      _
    $region3: #{tpu_custom_call.1} parent=1 // pred_check_branch
      %13 = sbr.rel (0) target = $region5
    $region4: #{tpu_custom_call.1} parent=1 // pred_region
      %15 = vsyncadd [#allocation3], 0
      %s16 = sshll.u32 %s0, 4
      %s17 = int_to_ptr.hbm [resolvable:$true] %s16
      %s18 = sshll.u32 [#allocation2], 4
      %s19 = int_to_ptr.vmem [resolvable:$true] %s18
      %24 = dma.hbm_to_vmem [thread:$0]  %s17, 512, %s19, [#allocation3], 128, 128, 8
    $region5: #{tpu_custom_call.1} parent=1 // pred_fallthru
      _
    // Predicated region
    $region6: #{tpu_custom_call.1} parent=1 // pred_check
      _
    $region7: #{tpu_custom_call.1} parent=1 // pred_check_branch
      %26 = sbr.rel (0) target = $region9
    $region8: #{tpu_custom_call.1} parent=1 // pred_region
      %28 = vsyncadd [#allocation6], 0
      %s29 = sshll.u32 %s1, 4
      %s30 = int_to_ptr.hbm [resolvable:$true] %s29
      %s31 = sshll.u32 [#allocation5], 4
      %s32 = int_to_ptr.vmem [resolvable:$true] %s31
      %37 = dma.hbm_to_vmem [thread:$0]  %s30, 512, %s32, [#allocation6], 128, 128, 8
    $region9: #{tpu_custom_call.1} parent=1 // pred_fallthru
      _
    // Predicated region
    $region10: #{tpu_custom_call.1} parent=1 // pred_check
      _
    $region11: #{tpu_custom_call.1} parent=1 // pred_check_branch
      %39 = sbr.rel (0) target = $region13
    $region12: #{tpu_custom_call.1} parent=1 // pred_region
      _
    $region13: #{tpu_custom_call.1} parent=1 // pred_fallthru
      _
    // Predicated region
    $region14: #{tpu_custom_call.1} parent=1 // pred_check
      _
    $region15: #{tpu_custom_call.1} parent=1 // pred_check_branch
      %41 = sbr.rel (0) target = $region17
    $region16: #{tpu_custom_call.1} parent=1 // pred_region
      _
    $region17: #{tpu_custom_call.1} parent=1 // pred_fallthru
      _
    // Predicated region
    $region18: #{tpu_custom_call.1} parent=1 // pred_check
      _
    $region19: #{tpu_custom_call.1} parent=1 // pred_check_branch
      %43 = sbr.rel (0) target = $region21
    $region20: #{tpu_custom_call.1} parent=1 // pred_region
      %45 = dma.done [#allocation3], 512
    $region21: #{tpu_custom_call.1} parent=1 // pred_fallthru
      _
    // Predicated region
    $region22: #{tpu_custom_call.1} parent=1 // pred_check
      _
    $region23: #{tpu_custom_call.1} parent=1 // pred_check_branch
      %47 = sbr.rel (0) target = $region25
    $region24: #{tpu_custom_call.1} parent=1 // pred_region
      %49 = dma.done [#allocation6], 512
    $region25: #{tpu_custom_call.1} parent=1 // pred_fallthru
      _
    %v50 = vld [vmem:[#allocation2] sm:$0xff]
    %v51 = vld [vmem:[#allocation2 + $0x8] sm:$0xff]
    %v52 = vld [vmem:[#allocation2 + $0x10] sm:$0xff]
    %v53 = vld [vmem:[#allocation2 + $0x18] sm:$0xff]
    %v54 = vld [vmem:[#allocation5] sm:$0xff]
    %v55 = vld [vmem:[#allocation5 + $0x8] sm:$0xff]
    %v56 = vld [vmem:[#allocation5 + $0x10] sm:$0xff]
    %v57 = vld [vmem:[#allocation5 + $0x18] sm:$0x3f]
    %v58 = vld [vmem:[%s2] sm:$0x1]
    %v59 = vld [vmem:[%s3] sm:$0x1]
    %v61 = vperm.slane %v58, 0
    %vm63 = vcmask 244736
    %v65 = vsel %vm63, %v50, 0
    %v68 = vsel %vm63, %v51, 0
    %v71 = vsel %vm63, %v52, 0
    %v74 = vsel %vm63, %v53, 0
    %vm76 = vcmask 1045504
    %v78 = vsel %vm76, %v57, 0
    %80 = vmatpush.msra.mxu0 0.0
    %81 = vmatpush.msra.mxu0 0.0
    %82 = vmatpush.msra.mxu0 0.0
    %83 = vmatpush.msra.mxu0 0.0
    %84 = vmatpush.msra.mxu0 0.0
    %85 = vmatpush.msra.mxu0 0.0
    %86 = vmatpush.msra.mxu0 0.0
    %87 = vmatpush.msra.mxu0 0.0
    %88 = vmatpush.msra.mxu0 0.0
    %89 = vmatpush.msra.mxu0 0.0
    %90 = vmatpush.msra.mxu0 0.0
    %91 = vmatpush.msra.mxu0 0.0
    %92 = vmatpush.msra.mxu0 %v78
    %93 = vmatpush.msra.mxu0 %v56
    %94 = vmatpush.msra.mxu0 %v55
    %95 = vmatpush.msra.mxu0 %v54
    %96 = vmatmul.f32.gmra.mxu0 %v65
    %v97 = vpop.f32.mrf.mxu0
    %v98 = vadd.f32 %v61, %v97
    %99 = vmatmul.f32.gmra.mxu0 %v68
    %v100 = vpop.f32.mrf.mxu0
    %v101 = vadd.f32 %v61, %v100
    %102 = vmatmul.f32.gmra.mxu0 %v71
    %v103 = vpop.f32.mrf.mxu0
    %v104 = vadd.f32 %v61, %v103
    %105 = vmatmul.f32.gmra.mxu0 %v74
    %v106 = vpop.f32.mrf.mxu0
    %v107 = vadd.f32 %v61, %v106
    %108 = vdwg.mxu0
    %v109 = vtanh.pop %v98
    %v110 = vtanh.pop %v101
    %v111 = vtanh.pop %v104
    %v112 = vtanh.pop %v107
    %v114 = vperm.slane %v59, 0
    %v116 = vmul.f32 %v109, %v114
    %v117 = vmul.f32 %v110, %v114
    %v118 = vmul.f32 %v111, %v114
    %v119 = vmul.f32 %v112, %v114
    %v120 = vsel %vm63, %v116, 0.0
    %121 = vadd.xlane.f32.xlu0 %v120
    %v122 = vpop.xlane.xlu0 %121
    %v123 = vsel %vm63, %v117, 0.0
    %124 = vadd.xlane.f32.xlu0 %v123
    %v125 = vpop.xlane.xlu0 %124
    %v126 = vsel %vm63, %v118, 0.0
    %127 = vadd.xlane.f32.xlu0 %v126
    %v128 = vpop.xlane.xlu0 %127
    %v129 = vsel %vm63, %v119, 0.0
    %130 = vadd.xlane.f32.xlu0 %v129
    %v131 = vpop.xlane.xlu0 %130
    %v132 = vtanh.pop %v122
    %v133 = vtanh.pop %v125
    %v134 = vtanh.pop %v128
    %v135 = vtanh.pop %v131
    %v136 = vrot.slane %v132, 4
    %v137 = vmax.f32 %v132, %v136
    %v138 = vrot.slane %v137, 2
    %v139 = vmax.f32 %v137, %v138
    %v140 = vrot.slane %v139, 1
    %v141 = vmax.f32 %v139, %v140
    %v142 = vsub.f32 %v132, %v141
    %v143 = vmul.f32 %v142, 1.442695
    %v144 = vpow.pop %v143
    %v145 = vrot.slane %v144, 4
    %v146 = vadd.f32 %v144, %v145
    %v147 = vrot.slane %v146, 2
    %v148 = vadd.f32 %v146, %v147
    %v149 = vrot.slane %v148, 1
    %v150 = vadd.f32 %v148, %v149
    %v151 = vrcp.pop %v150
    %v152 = vmul.f32 %v144, %v151
    %153 = vst.msk [vmem:[#allocation7] sm:$0xff] %vm63, %v50
    %v154 = vmul.f32 %v50, %v152
    %s155 = scalar_lea.vmem [#allocation7], 8
    %156 = vst.msk [vmem:[%s155] sm:$0xff] %vm63, %v154
    %v157 = vrot.slane %v133, 4
    %v158 = vmax.f32 %v133, %v157
    %v159 = vrot.slane %v158, 2
    %v160 = vmax.f32 %v158, %v159
    %v161 = vrot.slane %v160, 1
    %v162 = vmax.f32 %v160, %v161
    %v163 = vsub.f32 %v133, %v162
    %v164 = vmul.f32 %v163, 1.442695
    %v165 = vpow.pop %v164
    %v166 = vrot.slane %v165, 4
    %v167 = vadd.f32 %v165, %v166
    %v168 = vrot.slane %v167, 2
    %v169 = vadd.f32 %v167, %v168
    %v170 = vrot.slane %v169, 1
    %v171 = vadd.f32 %v169, %v170
    %v172 = vrcp.pop %v171
    %v173 = vmul.f32 %v165, %v172
    %s174 = scalar_lea.vmem [#allocation7], 16
    %175 = vst.msk [vmem:[%s174] sm:$0xff] %vm63, %v51
    %v176 = vmul.f32 %v51, %v173
    %s177 = scalar_lea.vmem [#allocation7], 24
    %178 = vst.msk [vmem:[%s177] sm:$0xff] %vm63, %v176
    %v179 = vrot.slane %v134, 4
    %v180 = vmax.f32 %v134, %v179
    %v181 = vrot.slane %v180, 2
    %v182 = vmax.f32 %v180, %v181
    %v183 = vrot.slane %v182, 1
    %v184 = vmax.f32 %v182, %v183
    %v185 = vsub.f32 %v134, %v184
    %v186 = vmul.f32 %v185, 1.442695
    %v187 = vpow.pop %v186
    %v188 = vrot.slane %v187, 4
    %v189 = vadd.f32 %v187, %v188
    %v190 = vrot.slane %v189, 2
    %v191 = vadd.f32 %v189, %v190
    %v192 = vrot.slane %v191, 1
    %v193 = vadd.f32 %v191, %v192
    %v194 = vrcp.pop %v193
    %v195 = vmul.f32 %v187, %v194
    %s196 = scalar_lea.vmem [#allocation7], 32
    %197 = vst.msk [vmem:[%s196] sm:$0xff] %vm63, %v52
    %v198 = vmul.f32 %v52, %v195
    %s199 = scalar_lea.vmem [#allocation7], 40
    %200 = vst.msk [vmem:[%s199] sm:$0xff] %vm63, %v198
    %v201 = vrot.slane %v135, 4
    %v202 = vmax.f32 %v135, %v201
    %v203 = vrot.slane %v202, 2
    %v204 = vmax.f32 %v202, %v203
    %v205 = vrot.slane %v204, 1
    %v206 = vmax.f32 %v204, %v205
    %v207 = vsub.f32 %v135, %v206
    %v208 = vmul.f32 %v207, 1.442695
    %v209 = vpow.pop %v208
    %v210 = vrot.slane %v209, 4
    %v211 = vadd.f32 %v209, %v210
    %v212 = vrot.slane %v211, 2
    %v213 = vadd.f32 %v211, %v212
    %v214 = vrot.slane %v213, 1
    %v215 = vadd.f32 %v213, %v214
    %v216 = vrcp.pop %v215
    %v217 = vmul.f32 %v209, %v216
    %s218 = scalar_lea.vmem [#allocation7], 48
    %219 = vst.msk [vmem:[%s218] sm:$0xff] %vm63, %v53
    %v220 = vmul.f32 %v53, %v217
    %s221 = scalar_lea.vmem [#allocation7], 56
    %222 = vst.msk [vmem:[%s221] sm:$0xff] %vm63, %v220
    // Predicated region
    $region26: #{tpu_custom_call.1} parent=1 // pred_check
      _
    $region27: #{tpu_custom_call.1} parent=1 // pred_check_branch
      %224 = sbr.rel (0) target = $region29
    $region28: #{tpu_custom_call.1} parent=1 // pred_region
      %226 = vsyncadd [#allocation4], 0
      %s227 = sshll.u32 [#allocation7], 4
      %s228 = int_to_ptr.vmem [resolvable:$true] %s227
      %s229 = sshll.u32 %s4, 4
      %s230 = int_to_ptr.hbm [resolvable:$true] %s229
      %235 = dma.vmem_to_hbm [thread:$0]  %s228, 1024, %s230, [#allocation4], 128, 128, 8
    $region29: #{tpu_custom_call.1} parent=1 // pred_fallthru
      _
    // Predicated region
    $region30: #{tpu_custom_call.1} parent=1 // pred_check
      _
    $region31: #{tpu_custom_call.1} parent=1 // pred_check_branch
      %237 = sbr.rel (0) target = $region33
    $region32: #{tpu_custom_call.1} parent=1 // pred_region
      %239 = dma.done [#allocation4], 1024
    $region33: #{tpu_custom_call.1} parent=1 // pred_fallthru
      _
    %240 = vsyncpa [#allocation3], 1
    %241 = vsyncpa [#allocation6], 1
    %242 = vsyncpa [#allocation4], 1

</llo_original>
